<compile_context>
chip_gen: v5e
topology: v5e:2x2
jax: 0.10.0
libtpu: 0.0.40
codegen_flags: <defaults>
</compile_context>

<pallas_src>
import math

import jax
import jax.numpy as jnp
from jax.experimental import pallas as pl
from jax.experimental.pallas import tpu as pltpu


def _round_up(x, m):
    return ((x + m - 1) // m) * m


def _make_aeattention_kernel(scale, n_real, n_pad, tq):
    def kernel(x_ref, wq_ref, wk_ref, wv_ref, att_ref, dist_ref, k_sc, v_sc):
        qi = pl.program_id(1)

        # ---- K / V projections: once per batch, cached in VMEM scratch. ----
        @pl.when(qi == 0)
        def _():
            x_all = x_ref[...]                                           # (n_pad, dim_in)
            k_sc[...] = jnp.dot(x_all, wk_ref[...],
                                preferred_element_type=jnp.float32)      # (n_pad, dk_pad)
            v_sc[...] = jnp.dot(x_all, wv_ref[...],
                                preferred_element_type=jnp.float32)      # (n_pad, dv_pad)

        # ---- Q projection for this query tile only. ----
        row0 = pl.multiple_of(qi * tq, tq)
        x_q = x_ref[pl.ds(row0, tq), :]                                  # (tq, dim_in)
        q = jnp.dot(x_q, wq_ref[...],
                    preferred_element_type=jnp.float32)                  # (tq, dk_pad)

        # ---- Scores: contract last dims directly (no explicit k.T transpose). ----
        s = jax.lax.dot_general(
            q, k_sc[...],
            dimension_numbers=(((1,), (1,)), ((), ())),
            preferred_element_type=jnp.float32) * scale                  # (tq, n_pad)

        # Mask padded key columns so the softmax normalizes over real keys only.
        if n_pad > n_real:
            key_idx = jax.lax.broadcasted_iota(jnp.int32, s.shape, 1)
            s = jnp.where(key_idx < n_real, s, -1e30)

        # ---- Numerically stable softmax along the key axis. ----
        s = s - jnp.max(s, axis=-1, keepdims=True)
        e = jnp.exp(s)
        denom = jnp.sum(e, axis=-1, keepdims=True)
        # EUP approximate reciprocal + one Newton-Raphson step (~f32-exact).
        r = pl.reciprocal(denom, approx=True)
        r = r * (2.0 - denom * r)
        dist = e * r                                                     # (tq, n_pad)

        # ---- Attention output. ----
        att = jnp.dot(dist, v_sc[...],
                      preferred_element_type=jnp.float32)                # (tq, dv_pad)

        att_ref[...] = att.astype(att_ref.dtype)
        dist_ref[...] = dist.astype(dist_ref.dtype)

    return kernel


def aeattention_pallas(x, wq, wk, wv):
    """x: (B, N, dim_in); wq/wk: (dim_in, dim_k); wv: (dim_in, dim_v).

    Returns (att, dist) matching AEattention.forward (weights pre-transposed).
    """
    B, N, dim_in = x.shape
    dim_k = wq.shape[1]
    dim_v = wv.shape[1]
    scale = 1.0 / (dim_k ** 0.5)

    # Lane-dense padding (multiples of the 128-lane vreg width).
    n_pad = _round_up(N, 128)
    dk_pad = _round_up(dim_k, 128)
    dv_pad = _round_up(dim_v, 128)

    # Query-tile size: largest of {512, 256, 128} dividing n_pad whose
    # double-buffered dist block stays within a modest VMEM budget.
    tq = 128
    for cand in (512, 256):
        if n_pad % cand == 0 and 2 * cand * n_pad * 4 <= (16 << 20):
            tq = cand
            break

    xp = jnp.pad(x, ((0, 0), (0, n_pad - N), (0, 0)))
    wqp = jnp.pad(wq, ((0, 0), (0, dk_pad - dim_k)))
    wkp = jnp.pad(wk, ((0, 0), (0, dk_pad - dim_k)))
    wvp = jnp.pad(wv, ((0, 0), (0, dv_pad - dim_v)))

    kernel = _make_aeattention_kernel(scale, N, n_pad, tq)

    # VMEM estimate: double-buffered in/out blocks + persistent K/V scratch.
    vmem_bytes = 4 * (
        2 * n_pad * dim_in
        + 2 * dim_in * (2 * dk_pad + dv_pad)
        + 2 * tq * dv_pad
        + 2 * tq * n_pad
        + n_pad * (dk_pad + dv_pad)
    )
    vmem_limit = min(64 * 1024 * 1024, max(32 * 1024 * 1024, (vmem_bytes * 3) // 2))

    cost = pl.CostEstimate(
        flops=int(2 * B * n_pad * dim_in * (2 * dk_pad + dv_pad)
                  + 2 * B * n_pad * n_pad * (dk_pad + dv_pad)),
        transcendentals=int(B * n_pad * n_pad),
        bytes_accessed=int(4 * (B * n_pad * dim_in
                                + dim_in * (2 * dk_pad + dv_pad)
                                + B * n_pad * dv_pad
                                + B * n_pad * n_pad)),
    )

    att_p, dist_p = pl.pallas_call(
        kernel,
        out_shape=(
            jax.ShapeDtypeStruct((B, n_pad, dv_pad), x.dtype),
            jax.ShapeDtypeStruct((B, n_pad, n_pad), x.dtype),
        ),
        grid_spec=pltpu.PrefetchScalarGridSpec(
            num_scalar_prefetch=0,
            grid=(B, n_pad // tq),
            in_specs=[
                # Full (padded) sequence per batch; block index changes only with b,
                # so the pipeline does not re-fetch x across query tiles.
                pl.BlockSpec((pl.Squeezed(), n_pad, dim_in), lambda b, qi: (b, 0, 0)),
                pl.BlockSpec((dim_in, dk_pad), lambda b, qi: (0, 0)),
                pl.BlockSpec((dim_in, dk_pad), lambda b, qi: (0, 0)),
                pl.BlockSpec((dim_in, dv_pad), lambda b, qi: (0, 0)),
            ],
            out_specs=[
                pl.BlockSpec((pl.Squeezed(), tq, dv_pad), lambda b, qi: (b, qi, 0)),
                pl.BlockSpec((pl.Squeezed(), tq, n_pad), lambda b, qi: (b, qi, 0)),
            ],
            scratch_shapes=[
                pltpu.VMEM((n_pad, dk_pad), jnp.float32),   # K cache (per batch)
                pltpu.VMEM((n_pad, dv_pad), jnp.float32),   # V cache (per batch)
            ],
        ),
        compiler_params=pltpu.CompilerParams(
            dimension_semantics=("parallel", "arbitrary"),
            vmem_limit_bytes=int(vmem_limit),
        ),
        cost_estimate=cost,
    )(xp, wqp, wkp, wvp)

    # Slice padding off in the wrapper (layout plumbing only).
    return att_p[:, :N, :dim_v], dist_p[:, :N, :N]


def aeattention_ref(x, wq, wk, wv):
    """Pure-JAX reference mirroring the PyTorch forward."""
    dim_k = wq.shape[1]
    q = jnp.einsum("bnd,dk->bnk", x, wq)
    k = jnp.einsum("bnd,dk->bnk", x, wk)
    v = jnp.einsum("bnd,dv->bnv", x, wv)
    dist = jnp.einsum("bik,bjk->bij", q, k) * (1.0 / dim_k ** 0.5)
    dist = jax.nn.softmax(dist, axis=-1)
    att = jnp.einsum("bij,bjv->biv", dist, v)
    return att, dist


if __name__ == "__main__":
    # Small shapes consistent with the module: x is (batch, seq, dim_in)
    B, N, dim_in, dim_k, dim_v = 2, 8, 32, 16, 32

    key = jax.random.PRNGKey(0)
    kx, kq, kk, kv = jax.random.split(key, 4)

    x = jax.random.normal(kx, (B, N, dim_in), dtype=jnp.float32)

    # Deterministic parameter init (Kaiming-uniform-like bound, as nn.Linear uses),
    # stored pre-transposed as (dim_in, dim_out).
    bound = 1.0 / math.sqrt(dim_in)
    wq = jax.random.uniform(kq, (dim_in, dim_k), minval=-bound, maxval=bound, dtype=jnp.float32)
    wk = jax.random.uniform(kk, (dim_in, dim_k), minval=-bound, maxval=bound, dtype=jnp.float32)
    wv = jax.random.uniform(kv, (dim_in, dim_v), minval=-bound, maxval=bound, dtype=jnp.float32)

    att, dist = aeattention_pallas(x, wq, wk, wv)
    jax.block_until_ready((att, dist))

    att_ref, dist_ref = aeattention_ref(x, wq, wk, wv)
    assert att.shape == (B, N, dim_v) and dist.shape == (B, N, N)
    assert jnp.allclose(att, att_ref, atol=2e-5, rtol=2e-5)
    assert jnp.allclose(dist, dist_ref, atol=2e-5, rtol=2e-5)

    print("KERNEL_OK")
</pallas_src>

<mosaic_0001>
module attributes {stable_mosaic.version = 11 : i64} {
  func.func @kernel(%arg0: i32, %arg1: i32, %arg2: memref<1x128x32xf32, #tpu.memory_space<vmem>>, %arg3: memref<32x128xf32, #tpu.memory_space<vmem>>, %arg4: memref<32x128xf32, #tpu.memory_space<vmem>>, %arg5: memref<32x128xf32, #tpu.memory_space<vmem>>, %arg6: memref<1x128x128xf32, #tpu.memory_space<vmem>>, %arg7: memref<1x128x128xf32, #tpu.memory_space<vmem>>, %arg8: memref<128x128xf32, #tpu.memory_space<vmem>>, %arg9: memref<128x128xf32, #tpu.memory_space<vmem>>) attributes {dimension_semantics = [#tpu.dimension_semantics<parallel>, #tpu.dimension_semantics<arbitrary>], iteration_bounds = array<i64: 2, 1>, scalar_prefetch = 0 : i64, scratch_operands = 2 : i64, tpu.core_type = #tpu.core_type<tc>, window_params = [{transform_indices = @transform_0, window_bounds = array<i64: 1, 128, 32>}, {pipeline_mode = #tpu.pipeline_mode<synchronous>, transform_indices = @transform_1, window_bounds = array<i64: 32, 128>}, {pipeline_mode = #tpu.pipeline_mode<synchronous>, transform_indices = @transform_2, window_bounds = array<i64: 32, 128>}, {pipeline_mode = #tpu.pipeline_mode<synchronous>, transform_indices = @transform_3, window_bounds = array<i64: 32, 128>}, {transform_indices = @transform_4, window_bounds = array<i64: 1, 128, 128>}, {transform_indices = @transform_5, window_bounds = array<i64: 1, 128, 128>}]} {
    %c0_i32 = arith.constant 0 : i32
    %0 = arith.cmpi eq, %arg1, %c0_i32 : i32
    %1 = arith.extui %0 : i1 to i32
    %c0_i32_0 = arith.constant 0 : i32
    %2 = arith.cmpi ne, %1, %c0_i32_0 : i32
    scf.if %2 {
      %c0_21 = arith.constant 0 : index
      %c0_22 = arith.constant 0 : index
      %c0_23 = arith.constant 0 : index
      %41 = vector.load %arg2[%c0_21, %c0_22, %c0_23] : memref<1x128x32xf32, #tpu.memory_space<vmem>>, vector<1x128x32xf32>
      %42 = vector.shape_cast %41 : vector<1x128x32xf32> to vector<128x32xf32>
      %c0_24 = arith.constant 0 : index
      %c0_25 = arith.constant 0 : index
      %43 = vector.load %arg4[%c0_24, %c0_25] : memref<32x128xf32, #tpu.memory_space<vmem>>, vector<32x128xf32>
      %cst_26 = arith.constant dense<0.000000e+00> : vector<128x128xf32>
      %44 = tpu.matmul %42, %43, %cst_26 {dimension_numbers = #tpu.dot_dimension_numbers<[1], [0], [0], [1], [0, 0, 1, 1], [], []>} : vector<128x32xf32>, vector<32x128xf32>, vector<128x128xf32> -> vector<128x128xf32>
      %c0_27 = arith.constant 0 : index
      %c0_28 = arith.constant 0 : index
      %45 = vector.load %arg8[%c0_27, %c0_28] : memref<128x128xf32, #tpu.memory_space<vmem>>, vector<128x128xf32>
      tpu.vector_store %arg8[%c0_27, %c0_28], %44 {strides = array<i32>} : memref<128x128xf32, #tpu.memory_space<vmem>>, vector<128x128xf32>,
      %c0_29 = arith.constant 0 : index
      %c0_30 = arith.constant 0 : index
      %46 = vector.load %arg5[%c0_29, %c0_30] : memref<32x128xf32, #tpu.memory_space<vmem>>, vector<32x128xf32>
      %cst_31 = arith.constant dense<0.000000e+00> : vector<128x128xf32>
      %47 = tpu.matmul %42, %46, %cst_31 {dimension_numbers = #tpu.dot_dimension_numbers<[1], [0], [0], [1], [0, 0, 1, 1], [], []>} : vector<128x32xf32>, vector<32x128xf32>, vector<128x128xf32> -> vector<128x128xf32>
      %c0_32 = arith.constant 0 : index
      %c0_33 = arith.constant 0 : index
      %48 = vector.load %arg9[%c0_32, %c0_33] : memref<128x128xf32, #tpu.memory_space<vmem>>, vector<128x128xf32>
      tpu.vector_store %arg9[%c0_32, %c0_33], %47 {strides = array<i32>} : memref<128x128xf32, #tpu.memory_space<vmem>>, vector<128x128xf32>,
    } else {
    }
    %c128_i32 = arith.constant 128 : i32
    %3 = arith.muli %arg1, %c128_i32 : i32
    %4 = tpu.assume_multiple %3, 128 : i32
    %c0 = arith.constant 0 : index
    %5 = arith.index_cast %4 : i32 to index
    %c0_1 = arith.constant 0 : index
    %6 = vector.load %arg2[%c0, %5, %c0_1] : memref<1x128x32xf32, #tpu.memory_space<vmem>>, vector<1x128x32xf32>
    %7 = vector.shape_cast %6 : vector<1x128x32xf32> to vector<128x32xf32>
    %c0_2 = arith.constant 0 : index
    %c0_3 = arith.constant 0 : index
    %8 = vector.load %arg3[%c0_2, %c0_3] : memref<32x128xf32, #tpu.memory_space<vmem>>, vector<32x128xf32>
    %cst = arith.constant dense<0.000000e+00> : vector<128x128xf32>
    %9 = tpu.matmul %7, %8, %cst {dimension_numbers = #tpu.dot_dimension_numbers<[1], [0], [0], [1], [0, 0, 1, 1], [], []>} : vector<128x32xf32>, vector<32x128xf32>, vector<128x128xf32> -> vector<128x128xf32>
    %c0_4 = arith.constant 0 : index
    %c0_5 = arith.constant 0 : index
    %10 = vector.load %arg8[%c0_4, %c0_5] : memref<128x128xf32, #tpu.memory_space<vmem>>, vector<128x128xf32>
    %cst_6 = arith.constant dense<0.000000e+00> : vector<128x128xf32>
    %11 = tpu.matmul %9, %10, %cst_6 {dimension_numbers = #tpu.dot_dimension_numbers<[1], [1], [0], [0], [0, 0, 1, 0], [], []>} : vector<128x128xf32>, vector<128x128xf32>, vector<128x128xf32> -> vector<128x128xf32>
    %cst_7 = arith.constant 2.500000e-01 : f32
    %12 = vector.broadcast %cst_7 : f32 to vector<128x128xf32>
    %13 = arith.mulf %11, %12 : vector<128x128xf32>
    %14 = tpu.iota {dimensions = array<i32: 1>} : vector<128x128xi32>
    %c8_i32 = arith.constant 8 : i32
    %15 = vector.broadcast %c8_i32 : i32 to vector<128x128xi32>
    %16 = arith.cmpi slt, %14, %15 : vector<128x128xi32>
    %cst_8 = arith.constant -1.000000e+30 : f32
    %17 = vector.broadcast %cst_8 : f32 to vector<128x128xf32>
    %18 = arith.select %16, %13, %17 : vector<128x128xi1>, vector<128x128xf32>
    %cst_9 = arith.constant dense<0xFF800000> : vector<128xf32>
    %19 = vector.multi_reduction <maximumf>, %18, %cst_9 [1] : vector<128x128xf32> to vector<128xf32>
    %20 = vector.shape_cast %19 : vector<128xf32> to vector<128x1xf32>
    %21 = vector.broadcast %20 : vector<128x1xf32> to vector<128x128xf32>
    %22 = arith.subf %18, %21 : vector<128x128xf32>
    %23 = math.exp %22 : vector<128x128xf32>
    %cst_10 = arith.constant dense<0.000000e+00> : vector<128xf32>
    %24 = vector.multi_reduction <add>, %23, %cst_10 [1] : vector<128x128xf32> to vector<128xf32>
    %25 = vector.shape_cast %24 : vector<128xf32> to vector<128x1xf32>
    %26 = tpu.reciprocal %25 {approx = true} : vector<128x1xf32> -> vector<128x1xf32>
    %27 = arith.mulf %25, %26 : vector<128x1xf32>
    %cst_11 = arith.constant 2.000000e+00 : f32
    %28 = vector.broadcast %cst_11 : f32 to vector<128x1xf32>
    %29 = arith.subf %28, %27 : vector<128x1xf32>
    %30 = arith.mulf %26, %29 : vector<128x1xf32>
    %31 = vector.broadcast %30 : vector<128x1xf32> to vector<128x128xf32>
    %32 = arith.mulf %23, %31 : vector<128x128xf32>
    %c0_12 = arith.constant 0 : index
    %c0_13 = arith.constant 0 : index
    %33 = vector.load %arg9[%c0_12, %c0_13] : memref<128x128xf32, #tpu.memory_space<vmem>>, vector<128x128xf32>
    %cst_14 = arith.constant dense<0.000000e+00> : vector<128x128xf32>
    %34 = tpu.matmul %32, %33, %cst_14 {dimension_numbers = #tpu.dot_dimension_numbers<[1], [0], [0], [1], [0, 0, 1, 1], [], []>} : vector<128x128xf32>, vector<128x128xf32>, vector<128x128xf32> -> vector<128x128xf32>
    %c0_15 = arith.constant 0 : index
    %c0_16 = arith.constant 0 : index
    %c0_17 = arith.constant 0 : index
    %35 = vector.load %arg6[%c0_15, %c0_16, %c0_17] : memref<1x128x128xf32, #tpu.memory_space<vmem>>, vector<1x128x128xf32>
    %36 = vector.shape_cast %35 : vector<1x128x128xf32> to vector<128x128xf32>
    %37 = vector.shape_cast %34 : vector<128x128xf32> to vector<1x128x128xf32>
    tpu.vector_store %arg6[%c0_15, %c0_16, %c0_17], %37 {strides = array<i32>} : memref<1x128x128xf32, #tpu.memory_space<vmem>>, vector<1x128x128xf32>,
    %c0_18 = arith.constant 0 : index
    %c0_19 = arith.constant 0 : index
    %c0_20 = arith.constant 0 : index
    %38 = vector.load %arg7[%c0_18, %c0_19, %c0_20] : memref<1x128x128xf32, #tpu.memory_space<vmem>>, vector<1x128x128xf32>
    %39 = vector.shape_cast %38 : vector<1x128x128xf32> to vector<128x128xf32>
    %40 = vector.shape_cast %32 : vector<128x128xf32> to vector<1x128x128xf32>
    tpu.vector_store %arg7[%c0_18, %c0_19, %c0_20], %40 {strides = array<i32>} : memref<1x128x128xf32, #tpu.memory_space<vmem>>, vector<1x128x128xf32>,
    return
  }
  func.func @transform_0(%arg0: i32, %arg1: i32) -> (i32, i32, i32) {
    %c0_i32 = arith.constant 0 : i32
    %c0_i32_0 = arith.constant 0 : i32
    %c0_i32_1 = arith.constant 0 : i32
    return %arg0, %c0_i32, %c0_i32_0 : i32, i32, i32
  }
  func.func @transform_1(%arg0: i32, %arg1: i32) -> (i32, i32) {
    %c0_i32 = arith.constant 0 : i32
    %c0_i32_0 = arith.constant 0 : i32
    %c0_i32_1 = arith.constant 0 : i32
    return %c0_i32, %c0_i32_0 : i32, i32
  }
  func.func @transform_2(%arg0: i32, %arg1: i32) -> (i32, i32) {
    %c0_i32 = arith.constant 0 : i32
    %c0_i32_0 = arith.constant 0 : i32
    %c0_i32_1 = arith.constant 0 : i32
    return %c0_i32, %c0_i32_0 : i32, i32
  }
  func.func @transform_3(%arg0: i32, %arg1: i32) -> (i32, i32) {
    %c0_i32 = arith.constant 0 : i32
    %c0_i32_0 = arith.constant 0 : i32
    %c0_i32_1 = arith.constant 0 : i32
    return %c0_i32, %c0_i32_0 : i32, i32
  }
  func.func @transform_4(%arg0: i32, %arg1: i32) -> (i32, i32, i32) {
    %c0_i32 = arith.constant 0 : i32
    %c0_i32_0 = arith.constant 0 : i32
    return %arg0, %arg1, %c0_i32 : i32, i32, i32
  }
  func.func @transform_5(%arg0: i32, %arg1: i32) -> (i32, i32, i32) {
    %c0_i32 = arith.constant 0 : i32
    %c0_i32_0 = arith.constant 0 : i32
    return %arg0, %arg1, %c0_i32 : i32, i32, i32
  }
}

</mosaic_0001>

<llo_original>
// kernel: tpu_custom_call.1
$region0: #{tpu_custom_call.1}
  #allocation0 [shape = 'u32[]', space=smem, size = 0x4, offset = 0x4, fixed_abs, tag = 'smem constant byte address 0x4 - core index']
  #allocation1 [shape = 'u32[72,128]{1,0:T(1,128)}', space=vmem, size = 0x9000, scoped, tag = 'internal scratch']
  #allocation2 [shape = 'f32[128,128]{1,0:T(8,128)}', space=vmem, size = 0x10000, scoped, tag = 'scratch operand']
  #allocation3 [shape = 'f32[128,128]{1,0:T(8,128)}', space=vmem, size = 0x10000, scoped, tag = 'scratch operand']
  %s0 = inlined_call_operand.vmem [shape: f32[2,128,32], index: 0, kind: input, shape index: {}]
  %s1 = inlined_call_operand.vmem [shape: f32[32,128], index: 1, kind: input, shape index: {}]
  %s2 = inlined_call_operand.vmem [shape: f32[32,128], index: 2, kind: input, shape index: {}]
  %s3 = inlined_call_operand.vmem [shape: f32[32,128], index: 3, kind: input, shape index: {}]
  %s4 = inlined_call_operand.hbm [shape: f32[2,128,128], index: 4, kind: output, shape index: {0}]
  %s5 = inlined_call_operand.hbm [shape: f32[2,128,128], index: 5, kind: output, shape index: {1}]
  %6 = xla_tuple %s4, %s5
  %s7 = sld [smem:[#allocation0]]
  $region61: #{tpu_custom_call.1} parent=0
    _
  %s9 = ssub.s32 1, %s7
  %s10 = scalar_select 0, %s9, %s7
  $region1: #{tpu_custom_call.1} parent=0
    #allocation4 [shape = 'u8[131072]{0}', space=vmem, size = 0x20000, scoped, tag = 'output window, operand 0']
    #allocation5 [shape = 's32[2]{0}', space=sflag, size = 0x8, scoped, tag = 'scoped memory for tpu_custom_call.1']
    #allocation6 [shape = 'u8[131072]{0}', space=vmem, size = 0x20000, scoped, tag = 'output window, operand 1']
    #allocation7 [shape = 's32[2]{0}', space=sflag, size = 0x8, scoped, tag = 'scoped memory for tpu_custom_call.1']
    %11 = vsyncpa [#allocation5], 0
    %s12 = scalar_lea.sflag [#allocation5], 1
    %13 = vsyncpa %s12, 0
    %14 = vsyncpa [#allocation7], 0
    %s15 = scalar_lea.sflag [#allocation7], 1
    %16 = vsyncpa %s15, 0
    loop: start=0, step=1, limit=4
    $region2: #{tpu_custom_call.1} parent=1 // loop_pre_header
      _
    $region3: #{tpu_custom_call.1} parent=1 // loop_header
      %s18 = sphi 0, %s22
      %p19 = scmp.ge.s32.totalorder %s18, 4
      %s25 = sphi 0, %s37
      %s26 = sphi 0, %s33
      %s27 = sphi 0, %s25
      %s28 = sphi 0, %s26
      %s29 = sphi 0, %s27
      %s30 = sphi 0, %s28
      %s40 = sphi 0, %s42
      %s43 = sphi 0, %s40
      %s44 = sphi 0, %s43
      %s60 = sphi 0, %s44
      %s64 = sphi 0, %s64
      %s66 = sphi 0, %s64
      %s67 = sphi 0, %s66
      %s81 = sphi 0, %s67
      %s85 = sphi 0, %s85
      %s87 = sphi 0, %s85
      %s88 = sphi 0, %s87
      %s102 = sphi 0, %s88
      %s106 = sphi 0, %s106
      %s108 = sphi 0, %s106
      %s109 = sphi 0, %s108
      %s123 = sphi 0, %s109
      %s131 = sphi 0, %s133
      %s134 = sphi 0, %s131
      %s135 = sphi 0, %s134
      %s151 = sphi 0, %s135
      %s159 = sphi 0, %s161
      %s162 = sphi 0, %s159
      %s163 = sphi 0, %s162
      %s179 = sphi 0, %s163
    $region4: #{tpu_custom_call.1} parent=1 // loop_header_branch
      %21 = sbr.rel (%p19) target = $region8
    $region5: #{tpu_custom_call.1} parent=1 // loop_body
      %s23 = ssub.s32 %s18, 1
      %s24 = ssub.s32 %s18, 2
      %s31 = sadd.s32 1, %s26
      %p32 = scmp.ge.s32.totalorder %s31, 1
      %s33 = scalar_select %p32, 0, %s31
      %s34 = sadd.s32 1, %s25
      %s35 = scalar_select %p32, %s34, %s25
      %p36 = scmp.ge.s32.totalorder %s35, 2
      %s37 = scalar_select %p36, 0, %s35
      %s38 = ssub.s32 %s25, %s37
      %p39 = scmp.eq.s32.totalorder %s38, 0
      %s41 = sadd.s32 %s40, 1
      %s42 = scalar_select %p39, %s40, %s41
      %p45 = pneg %p39
      %p46 = scmp.eq.s32.totalorder %s18, 1
      %p47 = por %p45, %p46
      %p48 = scmp.ne.s32.totalorder %s40, %s43
      %p49 = scmp.eq.s32.totalorder %s18, 0
      %p50 = por %p48, %p49
      %p51 = scmp.ne.s32.totalorder %s40, %s43
      %p52 = scmp.eq.s32.totalorder %s23, 1
      %p53 = por %p51, %p52
      %p54 = scmp.ne.s32.totalorder %s43, %s44
      %p55 = scmp.eq.s32.totalorder %s23, 0
      %p56 = por %p54, %p55
      %p57 = scmp.ne.s32.totalorder %s43, %s44
      %p58 = scmp.eq.s32.totalorder %s24, 1
      %p59 = por %p57, %p58
      %p61 = scmp.ne.s32.totalorder %s44, %s60
      %p62 = scmp.eq.s32.totalorder %s24, 0
      %p63 = por %p61, %p62
      %s65 = sadd.s32 %s64, 1
      %p68 = scmp.eq.s32.totalorder %s18, 1
      %p69 = scmp.ne.s32.totalorder %s64, %s66
      %p70 = scmp.eq.s32.totalorder %s18, 0
      %p71 = por %p69, %p70
      %p72 = scmp.ne.s32.totalorder %s64, %s66
      %p73 = scmp.eq.s32.totalorder %s23, 1
      %p74 = por %p72, %p73
      %p75 = scmp.ne.s32.totalorder %s66, %s67
      %p76 = scmp.eq.s32.totalorder %s23, 0
      %p77 = por %p75, %p76
      %p78 = scmp.ne.s32.totalorder %s66, %s67
      %p79 = scmp.eq.s32.totalorder %s24, 1
      %p80 = por %p78, %p79
      %p82 = scmp.ne.s32.totalorder %s67, %s81
      %p83 = scmp.eq.s32.totalorder %s24, 0
      %p84 = por %p82, %p83
      %s86 = sadd.s32 %s85, 1
      %p89 = scmp.eq.s32.totalorder %s18, 1
      %p90 = scmp.ne.s32.totalorder %s85, %s87
      %p91 = scmp.eq.s32.totalorder %s18, 0
      %p92 = por %p90, %p91
      %p93 = scmp.ne.s32.totalorder %s85, %s87
      %p94 = scmp.eq.s32.totalorder %s23, 1
      %p95 = por %p93, %p94
      %p96 = scmp.ne.s32.totalorder %s87, %s88
      %p97 = scmp.eq.s32.totalorder %s23, 0
      %p98 = por %p96, %p97
      %p99 = scmp.ne.s32.totalorder %s87, %s88
      %p100 = scmp.eq.s32.totalorder %s24, 1
      %p101 = por %p99, %p100
      %p103 = scmp.ne.s32.totalorder %s88, %s102
      %p104 = scmp.eq.s32.totalorder %s24, 0
      %p105 = por %p103, %p104
      %s107 = sadd.s32 %s106, 1
      %p110 = scmp.eq.s32.totalorder %s18, 1
      %p111 = scmp.ne.s32.totalorder %s106, %s108
      %p112 = scmp.eq.s32.totalorder %s18, 0
      %p113 = por %p111, %p112
      %p114 = scmp.ne.s32.totalorder %s106, %s108
      %p115 = scmp.eq.s32.totalorder %s23, 1
      %p116 = por %p114, %p115
      %p117 = scmp.ne.s32.totalorder %s108, %s109
      %p118 = scmp.eq.s32.totalorder %s23, 0
      %p119 = por %p117, %p118
      %p120 = scmp.ne.s32.totalorder %s108, %s109
      %p121 = scmp.eq.s32.totalorder %s24, 1
      %p122 = por %p120, %p121
      %p124 = scmp.ne.s32.totalorder %s109, %s123
      %p125 = scmp.eq.s32.totalorder %s24, 0
      %p126 = por %p124, %p125
      %s127 = ssub.s32 %s25, %s37
      %s128 = ssub.s32 %s26, %s33
      %s129 = sor.u32 %s127, %s128
      %p130 = scmp.eq.s32.totalorder %s129, 0
      %s132 = sadd.s32 %s131, 1
      %s133 = scalar_select %p130, %s131, %s132
      %p136 = pneg %p130
      %p137 = scmp.eq.s32.totalorder %s18, 1
      %p138 = por %p136, %p137
      %p139 = scmp.ne.s32.totalorder %s131, %s134
      %p140 = scmp.eq.s32.totalorder %s18, 0
      %p141 = por %p139, %p140
      %p142 = scmp.ne.s32.totalorder %s131, %s134
      %p143 = scmp.eq.s32.totalorder %s23, 1
      %p144 = por %p142, %p143
      %p145 = scmp.ne.s32.totalorder %s134, %s135
      %p146 = scmp.eq.s32.totalorder %s23, 0
      %p147 = por %p145, %p146
      %p148 = scmp.ne.s32.totalorder %s134, %s135
      %p149 = scmp.eq.s32.totalorder %s24, 1
      %p150 = por %p148, %p149
      %p152 = scmp.ne.s32.totalorder %s135, %s151
      %p153 = scmp.eq.s32.totalorder %s24, 0
      %p154 = por %p152, %p153
      %s155 = ssub.s32 %s25, %s37
      %s156 = ssub.s32 %s26, %s33
      %s157 = sor.u32 %s155, %s156
      %p158 = scmp.eq.s32.totalorder %s157, 0
      %s160 = sadd.s32 %s159, 1
      %s161 = scalar_select %p158, %s159, %s160
      %p164 = pneg %p158
      %p165 = scmp.eq.s32.totalorder %s18, 1
      %p166 = por %p164, %p165
      %p167 = scmp.ne.s32.totalorder %s159, %s162
      %p168 = scmp.eq.s32.totalorder %s18, 0
      %p169 = por %p167, %p168
      %p170 = scmp.ne.s32.totalorder %s159, %s162
      %p171 = scmp.eq.s32.totalorder %s23, 1
      %p172 = por %p170, %p171
      %p173 = scmp.ne.s32.totalorder %s162, %s163
      %p174 = scmp.eq.s32.totalorder %s23, 0
      %p175 = por %p173, %p174
      %p176 = scmp.ne.s32.totalorder %s162, %s163
      %p177 = scmp.eq.s32.totalorder %s24, 1
      %p178 = por %p176, %p177
      %p180 = scmp.ne.s32.totalorder %s163, %s179
      %p181 = scmp.eq.s32.totalorder %s24, 0
      %p182 = por %p180, %p181
      %p183 = scmp.le.s32.totalorder 1, %s18
      %p184 = scmp.lt.s32.totalorder %s18, 3
      %p185 = pnand %p183, %p184
      %p186 = pneg %p185
      // Predicated region
      $region9: #{tpu_custom_call.1} parent=5 // pred_check
        _
      $region10: #{tpu_custom_call.1} parent=5 // pred_check_branch
        %188 = sbr.rel (%p185) target = $region12
      $region11: #{tpu_custom_call.1} parent=5 // pred_region
        %s189 = ssub.s32 %s18, 1
        // Predicated region
        $region13: #{tpu_custom_call.1} parent=11 // pred_check
          %p190 = pneg %p77
        $region14: #{tpu_custom_call.1} parent=11 // pred_check_branch
          %192 = sbr.rel (%p190) target = $region16
        $region15: #{tpu_custom_call.1} parent=11 // pred_region
          _
        $region16: #{tpu_custom_call.1} parent=11 // pred_fallthru
          _
        // Predicated region
        $region17: #{tpu_custom_call.1} parent=11 // pred_check
          %p193 = pneg %p98
        $region18: #{tpu_custom_call.1} parent=11 // pred_check_branch
          %195 = sbr.rel (%p193) target = $region20
        $region19: #{tpu_custom_call.1} parent=11 // pred_region
          _
        $region20: #{tpu_custom_call.1} parent=11 // pred_fallthru
          _
        // Predicated region
        $region21: #{tpu_custom_call.1} parent=11 // pred_check
          %p196 = pneg %p119
        $region22: #{tpu_custom_call.1} parent=11 // pred_check_branch
          %198 = sbr.rel (%p196) target = $region24
        $region23: #{tpu_custom_call.1} parent=11 // pred_region
          _
        $region24: #{tpu_custom_call.1} parent=11 // pred_fallthru
          _
      $region12: #{tpu_custom_call.1} parent=5 // pred_fallthru
        _
      %p199 = scmp.lt.s32.totalorder %s18, 2
      // Predicated region
      $region25: #{tpu_custom_call.1} parent=5 // pred_check
        %p200 = pneg %p199
      $region26: #{tpu_custom_call.1} parent=5 // pred_check_branch
        %202 = sbr.rel (%p200) target = $region28
      $region27: #{tpu_custom_call.1} parent=5 // pred_region
        // Predicated region
        $region29: #{tpu_custom_call.1} parent=27 // pred_check
          %p203 = pneg %p50
        $region30: #{tpu_custom_call.1} parent=27 // pred_check_branch
          %205 = sbr.rel (%p203) target = $region32
        $region31: #{tpu_custom_call.1} parent=27 // pred_region
          %p206 = scmp.lt.s32.totalorder %s25, 1
          %s207 = scalar_select %p206, %s25, 1
          %s208 = smul.addr %s207, 16
          %s209 = smul.addr %s208, 8
          %s210 = scalar_lea.vmem %s0, %s209
        $region32: #{tpu_custom_call.1} parent=27 // pred_fallthru
          _
      $region28: #{tpu_custom_call.1} parent=5 // pred_fallthru
        _
      %p211 = scmp.le.s32.totalorder 1, %s18
      %p212 = scmp.lt.s32.totalorder %s18, 3
      %p213 = pnand %p211, %p212
      %p214 = pneg %p213
      // Predicated region
      $region33: #{tpu_custom_call.1} parent=5 // pred_check
        _
      $region34: #{tpu_custom_call.1} parent=5 // pred_check_branch
        %216 = sbr.rel (%p213) target = $region36
      $region35: #{tpu_custom_call.1} parent=5 // pred_region
        %s217 = ssub.s32 %s18, 1
        %p218 = scmp.lt.s32.totalorder %s27, 1
        %s219 = scalar_select %p218, %s27, 1
        %s220 = smul.addr %s219, 16
        %s221 = smul.addr %s220, 8
        %s222 = scalar_lea.vmem %s0, %s221
        %p223 = pneg %p56
        %p224 = pneg %p53
        %p225 = pneg %p77
        %p226 = pneg %p74
        %p227 = pneg %p98
        %p228 = pneg %p95
        %p229 = pneg %p119
        %p230 = pneg %p116
        %p231 = pneg %p147
        %p232 = pneg %p144
        %s233 = sand.u32 %s134, 1
        %s234 = scalar_lea.sflag [#allocation5], %s233
        %s235 = sand.u32 %s134, 1
        %s236 = smul.addr %s235, 128
        %s237 = scalar_lea.vmem [#allocation4], %s236
        %p238 = pneg %p175
        %p239 = pneg %p172
        %s240 = sand.u32 %s162, 1
        %s241 = scalar_lea.sflag [#allocation7], %s240
        %s242 = sand.u32 %s162, 1
        %s243 = smul.addr %s242, 128
        %s244 = scalar_lea.vmem [#allocation6], %s243
        %p245 = scmp.lt.s32.totalorder %s27, 1
        %s246 = scalar_select %p245, %s27, 1
        %s247 = smul.addr %s246, 16
        %s248 = smul.addr %s247, 8
        %s249 = scalar_lea.vmem %s0, %s248
        %s250 = smul.u32 16, %s28
        %s251 = smul.u32 16, %s28
        %p252 = scmp.eq.s32.totalorder %s28, 0
        // Predicated region
        $region37: #{tpu_custom_call.1} parent=35 // pred_check
          %p253 = pneg %p252
        $region38: #{tpu_custom_call.1} parent=35 // pred_check_branch
          %255 = sbr.rel (%p253) target = $region40
        $region39: #{tpu_custom_call.1} parent=35 // pred_region
          %v256 = vld [vmem:[%s249] sm:$0xff]
          %v257 = vld [vmem:[%s249 + $0x8] sm:$0xff]
          %v258 = vld [vmem:[%s249 + $0x10] sm:$0xff]
          %v259 = vld [vmem:[%s249 + $0x18] sm:$0xff]
          %v260 = vld [vmem:[%s249 + $0x20] sm:$0xff]
          %v261 = vld [vmem:[%s249 + $0x28] sm:$0xff]
          %v262 = vld [vmem:[%s249 + $0x30] sm:$0xff]
          %v263 = vld [vmem:[%s249 + $0x38] sm:$0xff]
          %v264 = vld [vmem:[%s249 + $0x40] sm:$0xff]
          %v265 = vld [vmem:[%s249 + $0x48] sm:$0xff]
          %v266 = vld [vmem:[%s249 + $0x50] sm:$0xff]
          %v267 = vld [vmem:[%s249 + $0x58] sm:$0xff]
          %v268 = vld [vmem:[%s249 + $0x60] sm:$0xff]
          %v269 = vld [vmem:[%s249 + $0x68] sm:$0xff]
          %v270 = vld [vmem:[%s249 + $0x70] sm:$0xff]
          %v271 = vld [vmem:[%s249 + $0x78] sm:$0xff]
          %v272 = vld [vmem:[%s2] sm:$0xff]
          %v273 = vld [vmem:[%s2 + $0x8] sm:$0xff]
          %v274 = vld [vmem:[%s2 + $0x10] sm:$0xff]
          %v275 = vld [vmem:[%s2 + $0x18] sm:$0xff]
          %vm276 = vcmask 261120
          %v278 = vsel %vm276, %v256, 0
          %v281 = vsel %vm276, %v257, 0
          %v284 = vsel %vm276, %v258, 0
          %v287 = vsel %vm276, %v259, 0
          %v290 = vsel %vm276, %v260, 0
          %v293 = vsel %vm276, %v261, 0
          %v296 = vsel %vm276, %v262, 0
          %v299 = vsel %vm276, %v263, 0
          %v302 = vsel %vm276, %v264, 0
          %v305 = vsel %vm276, %v265, 0
          %v308 = vsel %vm276, %v266, 0
          %v311 = vsel %vm276, %v267, 0
          %v314 = vsel %vm276, %v268, 0
          %v317 = vsel %vm276, %v269, 0
          %v320 = vsel %vm276, %v270, 0
          %v323 = vsel %vm276, %v271, 0
          %325 = vmatpush.msra.mxu0 0.0
          %326 = vmatpush.msra.mxu0 0.0
          %327 = vmatpush.msra.mxu0 0.0
          %328 = vmatpush.msra.mxu0 0.0
          %329 = vmatpush.msra.mxu0 0.0
          %330 = vmatpush.msra.mxu0 0.0
          %331 = vmatpush.msra.mxu0 0.0
          %332 = vmatpush.msra.mxu0 0.0
          %333 = vmatpush.msra.mxu0 0.0
          %334 = vmatpush.msra.mxu0 0.0
          %335 = vmatpush.msra.mxu0 0.0
          %336 = vmatpush.msra.mxu0 0.0
          %337 = vmatpush.msra.mxu0 %v275
          %338 = vmatpush.msra.mxu0 %v274
          %339 = vmatpush.msra.mxu0 %v273
          %340 = vmatpush.msra.mxu0 %v272
          %341 = vmatmul.f32.gmra.mxu0 %v278
          %v342 = vpop.f32.mrf.mxu0
          %v343 = vadd.f32 0.0, %v342
          %344 = vmatmul.f32.gmra.mxu0 %v281
          %v345 = vpop.f32.mrf.mxu0
          %v346 = vadd.f32 0.0, %v345
          %347 = vmatmul.f32.gmra.mxu0 %v284
          %v348 = vpop.f32.mrf.mxu0
          %v349 = vadd.f32 0.0, %v348
          %350 = vmatmul.f32.gmra.mxu0 %v287
          %v351 = vpop.f32.mrf.mxu0
          %v352 = vadd.f32 0.0, %v351
          %353 = vmatmul.f32.gmra.mxu0 %v290
          %v354 = vpop.f32.mrf.mxu0
          %v355 = vadd.f32 0.0, %v354
          %356 = vmatmul.f32.gmra.mxu0 %v293
          %v357 = vpop.f32.mrf.mxu0
          %v358 = vadd.f32 0.0, %v357
          %359 = vmatmul.f32.gmra.mxu0 %v296
          %v360 = vpop.f32.mrf.mxu0
          %v361 = vadd.f32 0.0, %v360
          %362 = vmatmul.f32.gmra.mxu0 %v299
          %v363 = vpop.f32.mrf.mxu0
          %v364 = vadd.f32 0.0, %v363
          %365 = vmatmul.f32.gmra.mxu0 %v302
          %v366 = vpop.f32.mrf.mxu0
          %v367 = vadd.f32 0.0, %v366
          %368 = vmatmul.f32.gmra.mxu0 %v305
          %v369 = vpop.f32.mrf.mxu0
          %v370 = vadd.f32 0.0, %v369
          %371 = vmatmul.f32.gmra.mxu0 %v308
          %v372 = vpop.f32.mrf.mxu0
          %v373 = vadd.f32 0.0, %v372
          %374 = vmatmul.f32.gmra.mxu0 %v311
          %v375 = vpop.f32.mrf.mxu0
          %v376 = vadd.f32 0.0, %v375
          %377 = vmatmul.f32.gmra.mxu0 %v314
          %v378 = vpop.f32.mrf.mxu0
          %v379 = vadd.f32 0.0, %v378
          %380 = vmatmul.f32.gmra.mxu0 %v317
          %v381 = vpop.f32.mrf.mxu0
          %v382 = vadd.f32 0.0, %v381
          %383 = vmatmul.f32.gmra.mxu0 %v320
          %v384 = vpop.f32.mrf.mxu0
          %v385 = vadd.f32 0.0, %v384
          %386 = vmatmul.f32.gmra.mxu0 %v323
          %v387 = vpop.f32.mrf.mxu0
          %v388 = vadd.f32 0.0, %v387
          %389 = vdwg.mxu0
          %390 = vst [vmem:[#allocation2] sm:$0xff] %v343
          %391 = vst [vmem:[#allocation2 + $0x8] sm:$0xff] %v346
          %392 = vst [vmem:[#allocation2 + $0x10] sm:$0xff] %v349
          %393 = vst [vmem:[#allocation2 + $0x18] sm:$0xff] %v352
          %394 = vst [vmem:[#allocation2 + $0x20] sm:$0xff] %v355
          %395 = vst [vmem:[#allocation2 + $0x28] sm:$0xff] %v358
          %396 = vst [vmem:[#allocation2 + $0x30] sm:$0xff] %v361
          %397 = vst [vmem:[#allocation2 + $0x38] sm:$0xff] %v364
          %398 = vst [vmem:[#allocation2 + $0x40] sm:$0xff] %v367
          %399 = vst [vmem:[#allocation2 + $0x48] sm:$0xff] %v370
          %400 = vst [vmem:[#allocation2 + $0x50] sm:$0xff] %v373
          %401 = vst [vmem:[#allocation2 + $0x58] sm:$0xff] %v376
          %402 = vst [vmem:[#allocation2 + $0x60] sm:$0xff] %v379
          %403 = vst [vmem:[#allocation2 + $0x68] sm:$0xff] %v382
          %404 = vst [vmem:[#allocation2 + $0x70] sm:$0xff] %v385
          %405 = vst [vmem:[#allocation2 + $0x78] sm:$0xff] %v388
          %v406 = vld [vmem:[%s3] sm:$0xff]
          %v407 = vld [vmem:[%s3 + $0x8] sm:$0xff]
          %v408 = vld [vmem:[%s3 + $0x10] sm:$0xff]
          %v409 = vld [vmem:[%s3 + $0x18] sm:$0xff]
          %410 = vmatpush.msra.mxu0 0.0
          %411 = vmatpush.msra.mxu0 0.0
          %412 = vmatpush.msra.mxu0 0.0
          %413 = vmatpush.msra.mxu0 0.0
          %414 = vmatpush.msra.mxu0 0.0
          %415 = vmatpush.msra.mxu0 0.0
          %416 = vmatpush.msra.mxu0 0.0
          %417 = vmatpush.msra.mxu0 0.0
          %418 = vmatpush.msra.mxu0 0.0
          %419 = vmatpush.msra.mxu0 0.0
          %420 = vmatpush.msra.mxu0 0.0
          %421 = vmatpush.msra.mxu0 0.0
          %422 = vmatpush.msra.mxu0 %v409
          %423 = vmatpush.msra.mxu0 %v408
          %424 = vmatpush.msra.mxu0 %v407
          %425 = vmatpush.msra.mxu0 %v406
          %426 = vmatmul.f32.gmra.mxu0 %v278
          %v427 = vpop.f32.mrf.mxu0
          %v428 = vadd.f32 0.0, %v427
          %429 = vmatmul.f32.gmra.mxu0 %v281
          %v430 = vpop.f32.mrf.mxu0
          %v431 = vadd.f32 0.0, %v430
          %432 = vmatmul.f32.gmra.mxu0 %v284
          %v433 = vpop.f32.mrf.mxu0
          %v434 = vadd.f32 0.0, %v433
          %435 = vmatmul.f32.gmra.mxu0 %v287
          %v436 = vpop.f32.mrf.mxu0
          %v437 = vadd.f32 0.0, %v436
          %438 = vmatmul.f32.gmra.mxu0 %v290
          %v439 = vpop.f32.mrf.mxu0
          %v440 = vadd.f32 0.0, %v439
          %441 = vmatmul.f32.gmra.mxu0 %v293
          %v442 = vpop.f32.mrf.mxu0
          %v443 = vadd.f32 0.0, %v442
          %444 = vmatmul.f32.gmra.mxu0 %v296
          %v445 = vpop.f32.mrf.mxu0
          %v446 = vadd.f32 0.0, %v445
          %447 = vmatmul.f32.gmra.mxu0 %v299
          %v448 = vpop.f32.mrf.mxu0
          %v449 = vadd.f32 0.0, %v448
          %450 = vmatmul.f32.gmra.mxu0 %v302
          %v451 = vpop.f32.mrf.mxu0
          %v452 = vadd.f32 0.0, %v451
          %453 = vmatmul.f32.gmra.mxu0 %v305
          %v454 = vpop.f32.mrf.mxu0
          %v455 = vadd.f32 0.0, %v454
          %456 = vmatmul.f32.gmra.mxu0 %v308
          %v457 = vpop.f32.mrf.mxu0
          %v458 = vadd.f32 0.0, %v457
          %459 = vmatmul.f32.gmra.mxu0 %v311
          %v460 = vpop.f32.mrf.mxu0
          %v461 = vadd.f32 0.0, %v460
          %462 = vmatmul.f32.gmra.mxu0 %v314
          %v463 = vpop.f32.mrf.mxu0
          %v464 = vadd.f32 0.0, %v463
          %465 = vmatmul.f32.gmra.mxu0 %v317
          %v466 = vpop.f32.mrf.mxu0
          %v467 = vadd.f32 0.0, %v466
          %468 = vmatmul.f32.gmra.mxu0 %v320
          %v469 = vpop.f32.mrf.mxu0
          %v470 = vadd.f32 0.0, %v469
          %471 = vmatmul.f32.gmra.mxu0 %v323
          %v472 = vpop.f32.mrf.mxu0
          %v473 = vadd.f32 0.0, %v472
          %474 = vdwg.mxu0
          %475 = vst [vmem:[#allocation3] sm:$0xff] %v428
          %476 = vst [vmem:[#allocation3 + $0x8] sm:$0xff] %v431
          %477 = vst [vmem:[#allocation3 + $0x10] sm:$0xff] %v434
          %478 = vst [vmem:[#allocation3 + $0x18] sm:$0xff] %v437
          %479 = vst [vmem:[#allocation3 + $0x20] sm:$0xff] %v440
          %480 = vst [vmem:[#allocation3 + $0x28] sm:$0xff] %v443
          %481 = vst [vmem:[#allocation3 + $0x30] sm:$0xff] %v446
          %482 = vst [vmem:[#allocation3 + $0x38] sm:$0xff] %v449
          %483 = vst [vmem:[#allocation3 + $0x40] sm:$0xff] %v452
          %484 = vst [vmem:[#allocation3 + $0x48] sm:$0xff] %v455
          %485 = vst [vmem:[#allocation3 + $0x50] sm:$0xff] %v458
          %486 = vst [vmem:[#allocation3 + $0x58] sm:$0xff] %v461
          %487 = vst [vmem:[#allocation3 + $0x60] sm:$0xff] %v464
          %488 = vst [vmem:[#allocation3 + $0x68] sm:$0xff] %v467
          %489 = vst [vmem:[#allocation3 + $0x70] sm:$0xff] %v470
          %490 = vst [vmem:[#allocation3 + $0x78] sm:$0xff] %v473
        $region40: #{tpu_custom_call.1} parent=35 // pred_fallthru
          _
        %s491 = smul.u32 %s28, 128
        %s492 = scalar_lea.vmem %s249, %s491
        %v493 = vld [vmem:[%s492] sm:$0xff]
        %v494 = vld [vmem:[%s492 + $0x8] sm:$0xff]
        %v495 = vld [vmem:[%s492 + $0x10] sm:$0xff]
        %v496 = vld [vmem:[%s492 + $0x18] sm:$0xff]
        %v497 = vld [vmem:[%s492 + $0x20] sm:$0xff]
        %v498 = vld [vmem:[%s492 + $0x28] sm:$0xff]
        %v499 = vld [vmem:[%s492 + $0x30] sm:$0xff]
        %v500 = vld [vmem:[%s492 + $0x38] sm:$0xff]
        %v501 = vld [vmem:[%s492 + $0x40] sm:$0xff]
        %v502 = vld [vmem:[%s492 + $0x48] sm:$0xff]
        %v503 = vld [vmem:[%s492 + $0x50] sm:$0xff]
        %v504 = vld [vmem:[%s492 + $0x58] sm:$0xff]
        %v505 = vld [vmem:[%s492 + $0x60] sm:$0xff]
        %v506 = vld [vmem:[%s492 + $0x68] sm:$0xff]
        %v507 = vld [vmem:[%s492 + $0x70] sm:$0xff]
        %v508 = vld [vmem:[%s492 + $0x78] sm:$0xff]
        %v509 = vld [vmem:[%s1] sm:$0xff]
        %v510 = vld [vmem:[%s1 + $0x8] sm:$0xff]
        %v511 = vld [vmem:[%s1 + $0x10] sm:$0xff]
        %v512 = vld [vmem:[%s1 + $0x18] sm:$0xff]
        %vm513 = vcmask 261120
        %v515 = vsel %vm513, %v493, 0
        %v518 = vsel %vm513, %v494, 0
        %v521 = vsel %vm513, %v495, 0
        %v524 = vsel %vm513, %v496, 0
        %v527 = vsel %vm513, %v497, 0
        %v530 = vsel %vm513, %v498, 0
        %v533 = vsel %vm513, %v499, 0
        %v536 = vsel %vm513, %v500, 0
        %v539 = vsel %vm513, %v501, 0
        %v542 = vsel %vm513, %v502, 0
        %v545 = vsel %vm513, %v503, 0
        %v548 = vsel %vm513, %v504, 0
        %v551 = vsel %vm513, %v505, 0
        %v554 = vsel %vm513, %v506, 0
        %v557 = vsel %vm513, %v507, 0
        %v560 = vsel %vm513, %v508, 0
        %562 = vmatpush.msra.mxu0 0.0
        %563 = vmatpush.msra.mxu0 0.0
        %564 = vmatpush.msra.mxu0 0.0
        %565 = vmatpush.msra.mxu0 0.0
        %566 = vmatpush.msra.mxu0 0.0
        %567 = vmatpush.msra.mxu0 0.0
        %568 = vmatpush.msra.mxu0 0.0
        %569 = vmatpush.msra.mxu0 0.0
        %570 = vmatpush.msra.mxu0 0.0
        %571 = vmatpush.msra.mxu0 0.0
        %572 = vmatpush.msra.mxu0 0.0
        %573 = vmatpush.msra.mxu0 0.0
        %574 = vmatpush.msra.mxu0 %v512
        %575 = vmatpush.msra.mxu0 %v511
        %576 = vmatpush.msra.mxu0 %v510
        %577 = vmatpush.msra.mxu0 %v509
        %578 = vmatmul.f32.gmra.mxu0 %v515
        %v579 = vpop.f32.mrf.mxu0
        %v580 = vadd.f32 0.0, %v579
        %581 = vmatmul.f32.gmra.mxu0 %v518
        %v582 = vpop.f32.mrf.mxu0
        %v583 = vadd.f32 0.0, %v582
        %584 = vmatmul.f32.gmra.mxu0 %v521
        %v585 = vpop.f32.mrf.mxu0
        %v586 = vadd.f32 0.0, %v585
        %587 = vmatmul.f32.gmra.mxu0 %v524
        %v588 = vpop.f32.mrf.mxu0
        %v589 = vadd.f32 0.0, %v588
        %590 = vmatmul.f32.gmra.mxu0 %v527
        %v591 = vpop.f32.mrf.mxu0
        %v592 = vadd.f32 0.0, %v591
        %593 = vmatmul.f32.gmra.mxu0 %v530
        %v594 = vpop.f32.mrf.mxu0
        %v595 = vadd.f32 0.0, %v594
        %596 = vmatmul.f32.gmra.mxu0 %v533
        %v597 = vpop.f32.mrf.mxu0
        %v598 = vadd.f32 0.0, %v597
        %599 = vmatmul.f32.gmra.mxu0 %v536
        %v600 = vpop.f32.mrf.mxu0
        %v601 = vadd.f32 0.0, %v600
        %602 = vmatmul.f32.gmra.mxu0 %v539
        %v603 = vpop.f32.mrf.mxu0
        %v604 = vadd.f32 0.0, %v603
        %605 = vmatmul.f32.gmra.mxu0 %v542
        %v606 = vpop.f32.mrf.mxu0
        %v607 = vadd.f32 0.0, %v606
        %608 = vmatmul.f32.gmra.mxu0 %v545
        %v609 = vpop.f32.mrf.mxu0
        %v610 = vadd.f32 0.0, %v609
        %611 = vmatmul.f32.gmra.mxu0 %v548
        %v612 = vpop.f32.mrf.mxu0
        %v613 = vadd.f32 0.0, %v612
        %614 = vmatmul.f32.gmra.mxu0 %v551
        %v615 = vpop.f32.mrf.mxu0
        %v616 = vadd.f32 0.0, %v615
        %617 = vmatmul.f32.gmra.mxu0 %v554
        %v618 = vpop.f32.mrf.mxu0
        %v619 = vadd.f32 0.0, %v618
        %620 = vmatmul.f32.gmra.mxu0 %v557
        %v621 = vpop.f32.mrf.mxu0
        %v622 = vadd.f32 0.0, %v621
        %623 = vmatmul.f32.gmra.mxu0 %v560
        %v624 = vpop.f32.mrf.mxu0
        %v625 = vadd.f32 0.0, %v624
        %626 = vdwg.mxu0
        %v627 = vld [vmem:[#allocation2] sm:$0xff]
        %v628 = vld [vmem:[#allocation2 + $0x8] sm:$0xff]
        %v629 = vld [vmem:[#allocation2 + $0x10] sm:$0xff]
        %v630 = vld [vmem:[#allocation2 + $0x18] sm:$0xff]
        %v631 = vld [vmem:[#allocation2 + $0x20] sm:$0xff]
        %v632 = vld [vmem:[#allocation2 + $0x28] sm:$0xff]
        %v633 = vld [vmem:[#allocation2 + $0x30] sm:$0xff]
        %v634 = vld [vmem:[#allocation2 + $0x38] sm:$0xff]
        %v635 = vld [vmem:[#allocation2 + $0x40] sm:$0xff]
        %v636 = vld [vmem:[#allocation2 + $0x48] sm:$0xff]
        %v637 = vld [vmem:[#allocation2 + $0x50] sm:$0xff]
        %v638 = vld [vmem:[#allocation2 + $0x58] sm:$0xff]
        %v639 = vld [vmem:[#allocation2 + $0x60] sm:$0xff]
        %v640 = vld [vmem:[#allocation2 + $0x68] sm:$0xff]
        %v641 = vld [vmem:[#allocation2 + $0x70] sm:$0xff]
        %v642 = vld [vmem:[#allocation2 + $0x78] sm:$0xff]
        %643 = vmatpush.xpose.msra.mxu0 %v642
        %644 = vmatpush.xpose.msra.mxu0 %v641
        %645 = vmatpush.xpose.msra.mxu0 %v640
        %646 = vmatpush.xpose.msra.mxu0 %v639
        %647 = vmatpush.xpose.msra.mxu0 %v638
        %648 = vmatpush.xpose.msra.mxu0 %v637
        %649 = vmatpush.xpose.msra.mxu0 %v636
        %650 = vmatpush.xpose.msra.mxu0 %v635
        %651 = vmatpush.xpose.msra.mxu0 %v634
        %652 = vmatpush.xpose.msra.mxu0 %v633
        %653 = vmatpush.xpose.msra.mxu0 %v632
        %654 = vmatpush.xpose.msra.mxu0 %v631
        %655 = vmatpush.xpose.msra.mxu0 %v630
        %656 = vmatpush.xpose.msra.mxu0 %v629
        %657 = vmatpush.xpose.msra.mxu0 %v628
        %658 = vmatpush.xpose.msra.mxu0 %v627
        %659 = vmatmul.f32.gmra.mxu0 %v580
        %v660 = vpop.f32.mrf.mxu0
        %v661 = vadd.f32 0.0, %v660
        %662 = vmatmul.f32.gmra.mxu0 %v583
        %v663 = vpop.f32.mrf.mxu0
        %v664 = vadd.f32 0.0, %v663
        %665 = vmatmul.f32.gmra.mxu0 %v586
        %v666 = vpop.f32.mrf.mxu0
        %v667 = vadd.f32 0.0, %v666
        %668 = vmatmul.f32.gmra.mxu0 %v589
        %v669 = vpop.f32.mrf.mxu0
        %v670 = vadd.f32 0.0, %v669
        %671 = vmatmul.f32.gmra.mxu0 %v592
        %v672 = vpop.f32.mrf.mxu0
        %v673 = vadd.f32 0.0, %v672
        %674 = vmatmul.f32.gmra.mxu0 %v595
        %v675 = vpop.f32.mrf.mxu0
        %v676 = vadd.f32 0.0, %v675
        %677 = vmatmul.f32.gmra.mxu0 %v598
        %v678 = vpop.f32.mrf.mxu0
        %v679 = vadd.f32 0.0, %v678
        %680 = vmatmul.f32.gmra.mxu0 %v601
        %v681 = vpop.f32.mrf.mxu0
        %v682 = vadd.f32 0.0, %v681
        %683 = vmatmul.f32.gmra.mxu0 %v604
        %v684 = vpop.f32.mrf.mxu0
        %v685 = vadd.f32 0.0, %v684
        %686 = vmatmul.f32.gmra.mxu0 %v607
        %v687 = vpop.f32.mrf.mxu0
        %v688 = vadd.f32 0.0, %v687
        %689 = vmatmul.f32.gmra.mxu0 %v610
        %v690 = vpop.f32.mrf.mxu0
        %v691 = vadd.f32 0.0, %v690
        %692 = vmatmul.f32.gmra.mxu0 %v613
        %v693 = vpop.f32.mrf.mxu0
        %v694 = vadd.f32 0.0, %v693
        %695 = vmatmul.f32.gmra.mxu0 %v616
        %v696 = vpop.f32.mrf.mxu0
        %v697 = vadd.f32 0.0, %v696
        %698 = vmatmul.f32.gmra.mxu0 %v619
        %v699 = vpop.f32.mrf.mxu0
        %v700 = vadd.f32 0.0, %v699
        %701 = vmatmul.f32.gmra.mxu0 %v622
        %v702 = vpop.f32.mrf.mxu0
        %v703 = vadd.f32 0.0, %v702
        %704 = vmatmul.f32.gmra.mxu0 %v625
        %v705 = vpop.f32.mrf.mxu0
        %v706 = vadd.f32 0.0, %v705
        %707 = vdwg.mxu0
        %v708 = vmul.f32 %v661, 0.25
        %v709 = vmul.f32 %v664, 0.25
        %v710 = vmul.f32 %v667, 0.25
        %v711 = vmul.f32 %v670, 0.25
        %v712 = vmul.f32 %v673, 0.25
        %v713 = vmul.f32 %v676, 0.25
        %v714 = vmul.f32 %v679, 0.25
        %v715 = vmul.f32 %v682, 0.25
        %v716 = vmul.f32 %v685, 0.25
        %v717 = vmul.f32 %v688, 0.25
        %v718 = vmul.f32 %v691, 0.25
        %v719 = vmul.f32 %v694, 0.25
        %v720 = vmul.f32 %v697, 0.25
        %v721 = vmul.f32 %v700, 0.25
        %v722 = vmul.f32 %v703, 0.25
        %v723 = vmul.f32 %v706, 0.25
        %v724 = vlaneseq
        %v725 = vand.u32 %v724, 127
        %vm726 = vcmp.lt.s32.totalorder %v725, 8
        %v727 = vsel %vm726, %v708, -1e+30
        %v728 = vsel %vm726, %v709, -1e+30
        %v729 = vsel %vm726, %v710, -1e+30
        %v730 = vsel %vm726, %v711, -1e+30
        %v731 = vsel %vm726, %v712, -1e+30
        %v732 = vsel %vm726, %v713, -1e+30
        %v733 = vsel %vm726, %v714, -1e+30
        %v734 = vsel %vm726, %v715, -1e+30
        %v735 = vsel %vm726, %v716, -1e+30
        %v736 = vsel %vm726, %v717, -1e+30
        %v737 = vsel %vm726, %v718, -1e+30
        %v738 = vsel %vm726, %v719, -1e+30
        %v739 = vsel %vm726, %v720, -1e+30
        %v740 = vsel %vm726, %v721, -1e+30
        %v741 = vsel %vm726, %v722, -1e+30
        %v742 = vsel %vm726, %v723, -1e+30
        %743 = vmax.xlane.f32.xlu0 %v727
        %v744 = vpop.xlane.xlu0 %743
        %745 = vmax.xlane.f32.xlu0 %v728
        %v746 = vpop.xlane.xlu0 %745
        %747 = vmax.xlane.f32.xlu0 %v729
        %v748 = vpop.xlane.xlu0 %747
        %749 = vmax.xlane.f32.xlu0 %v730
        %v750 = vpop.xlane.xlu0 %749
        %751 = vmax.xlane.f32.xlu0 %v731
        %v752 = vpop.xlane.xlu0 %751
        %753 = vmax.xlane.f32.xlu0 %v732
        %v754 = vpop.xlane.xlu0 %753
        %755 = vmax.xlane.f32.xlu0 %v733
        %v756 = vpop.xlane.xlu0 %755
        %757 = vmax.xlane.f32.xlu0 %v734
        %v758 = vpop.xlane.xlu0 %757
        %759 = vmax.xlane.f32.xlu0 %v735
        %v760 = vpop.xlane.xlu0 %759
        %761 = vmax.xlane.f32.xlu0 %v736
        %v762 = vpop.xlane.xlu0 %761
        %763 = vmax.xlane.f32.xlu0 %v737
        %v764 = vpop.xlane.xlu0 %763
        %765 = vmax.xlane.f32.xlu0 %v738
        %v766 = vpop.xlane.xlu0 %765
        %767 = vmax.xlane.f32.xlu0 %v739
        %v768 = vpop.xlane.xlu0 %767
        %769 = vmax.xlane.f32.xlu0 %v740
        %v770 = vpop.xlane.xlu0 %769
        %771 = vmax.xlane.f32.xlu0 %v741
        %v772 = vpop.xlane.xlu0 %771
        %773 = vmax.xlane.f32.xlu0 %v742
        %v774 = vpop.xlane.xlu0 %773
        %v775 = vsub.f32 %v727, %v744
        %v776 = vsub.f32 %v728, %v746
        %v777 = vsub.f32 %v729, %v748
        %v778 = vsub.f32 %v730, %v750
        %v779 = vsub.f32 %v731, %v752
        %v780 = vsub.f32 %v732, %v754
        %v781 = vsub.f32 %v733, %v756
        %v782 = vsub.f32 %v734, %v758
        %v783 = vsub.f32 %v735, %v760
        %v784 = vsub.f32 %v736, %v762
        %v785 = vsub.f32 %v737, %v764
        %v786 = vsub.f32 %v738, %v766
        %v787 = vsub.f32 %v739, %v768
        %v788 = vsub.f32 %v740, %v770
        %v789 = vsub.f32 %v741, %v772
        %v790 = vsub.f32 %v742, %v774
        %v791 = vmul.f32 %v775, 1.442695
        %v792 = vpow.pop %v791
        %v793 = vmul.f32 %v776, 1.442695
        %v794 = vpow.pop %v793
        %v795 = vmul.f32 %v777, 1.442695
        %v796 = vpow.pop %v795
        %v797 = vmul.f32 %v778, 1.442695
        %v798 = vpow.pop %v797
        %v799 = vmul.f32 %v779, 1.442695
        %v800 = vpow.pop %v799
        %v801 = vmul.f32 %v780, 1.442695
        %v802 = vpow.pop %v801
        %v803 = vmul.f32 %v781, 1.442695
        %v804 = vpow.pop %v803
        %v805 = vmul.f32 %v782, 1.442695
        %v806 = vpow.pop %v805
        %v807 = vmul.f32 %v783, 1.442695
        %v808 = vpow.pop %v807
        %v809 = vmul.f32 %v784, 1.442695
        %v810 = vpow.pop %v809
        %v811 = vmul.f32 %v785, 1.442695
        %v812 = vpow.pop %v811
        %v813 = vmul.f32 %v786, 1.442695
        %v814 = vpow.pop %v813
        %v815 = vmul.f32 %v787, 1.442695
        %v816 = vpow.pop %v815
        %v817 = vmul.f32 %v788, 1.442695
        %v818 = vpow.pop %v817
        %v819 = vmul.f32 %v789, 1.442695
        %v820 = vpow.pop %v819
        %v821 = vmul.f32 %v790, 1.442695
        %v822 = vpow.pop %v821
        %823 = vadd.xlane.f32.xlu0 %v792
        %v824 = vpop.xlane.xlu0 %823
        %825 = vadd.xlane.f32.xlu0 %v794
        %v826 = vpop.xlane.xlu0 %825
        %827 = vadd.xlane.f32.xlu0 %v796
        %v828 = vpop.xlane.xlu0 %827
        %829 = vadd.xlane.f32.xlu0 %v798
        %v830 = vpop.xlane.xlu0 %829
        %831 = vadd.xlane.f32.xlu0 %v800
        %v832 = vpop.xlane.xlu0 %831
        %833 = vadd.xlane.f32.xlu0 %v802
        %v834 = vpop.xlane.xlu0 %833
        %835 = vadd.xlane.f32.xlu0 %v804
        %v836 = vpop.xlane.xlu0 %835
        %837 = vadd.xlane.f32.xlu0 %v806
        %v838 = vpop.xlane.xlu0 %837
        %839 = vadd.xlane.f32.xlu0 %v808
        %v840 = vpop.xlane.xlu0 %839
        %841 = vadd.xlane.f32.xlu0 %v810
        %v842 = vpop.xlane.xlu0 %841
        %843 = vadd.xlane.f32.xlu0 %v812
        %v844 = vpop.xlane.xlu0 %843
        %845 = vadd.xlane.f32.xlu0 %v814
        %v846 = vpop.xlane.xlu0 %845
        %847 = vadd.xlane.f32.xlu0 %v816
        %v848 = vpop.xlane.xlu0 %847
        %849 = vadd.xlane.f32.xlu0 %v818
        %v850 = vpop.xlane.xlu0 %849
        %851 = vadd.xlane.f32.xlu0 %v820
        %v852 = vpop.xlane.xlu0 %851
        %853 = vadd.xlane.f32.xlu0 %v822
        %v854 = vpop.xlane.xlu0 %853
        %v855 = vrcp.pop %v824
        %v856 = vrcp.pop %v826
        %v857 = vrcp.pop %v828
        %v858 = vrcp.pop %v830
        %v859 = vrcp.pop %v832
        %v860 = vrcp.pop %v834
        %v861 = vrcp.pop %v836
        %v862 = vrcp.pop %v838
        %v863 = vrcp.pop %v840
        %v864 = vrcp.pop %v842
        %v865 = vrcp.pop %v844
        %v866 = vrcp.pop %v846
        %v867 = vrcp.pop %v848
        %v868 = vrcp.pop %v850
        %v869 = vrcp.pop %v852
        %v870 = vrcp.pop %v854
        %v871 = vmul.f32 %v824, %v855
        %v872 = vmul.f32 %v826, %v856
        %v873 = vmul.f32 %v828, %v857
        %v874 = vmul.f32 %v830, %v858
        %v875 = vmul.f32 %v832, %v859
        %v876 = vmul.f32 %v834, %v860
        %v877 = vmul.f32 %v836, %v861
        %v878 = vmul.f32 %v838, %v862
        %v879 = vmul.f32 %v840, %v863
        %v880 = vmul.f32 %v842, %v864
        %v881 = vmul.f32 %v844, %v865
        %v882 = vmul.f32 %v846, %v866
        %v883 = vmul.f32 %v848, %v867
        %v884 = vmul.f32 %v850, %v868
        %v885 = vmul.f32 %v852, %v869
        %v886 = vmul.f32 %v854, %v870
        %v887 = vsub.f32 2.0, %v871
        %v888 = vsub.f32 2.0, %v872
        %v889 = vsub.f32 2.0, %v873
        %v890 = vsub.f32 2.0, %v874
        %v891 = vsub.f32 2.0, %v875
        %v892 = vsub.f32 2.0, %v876
        %v893 = vsub.f32 2.0, %v877
        %v894 = vsub.f32 2.0, %v878
        %v895 = vsub.f32 2.0, %v879
        %v896 = vsub.f32 2.0, %v880
        %v897 = vsub.f32 2.0, %v881
        %v898 = vsub.f32 2.0, %v882
        %v899 = vsub.f32 2.0, %v883
        %v900 = vsub.f32 2.0, %v884
        %v901 = vsub.f32 2.0, %v885
        %v902 = vsub.f32 2.0, %v886
        %v903 = vmul.f32 %v855, %v887
        %v904 = vmul.f32 %v856, %v888
        %v905 = vmul.f32 %v857, %v889
        %v906 = vmul.f32 %v858, %v890
        %v907 = vmul.f32 %v859, %v891
        %v908 = vmul.f32 %v860, %v892
        %v909 = vmul.f32 %v861, %v893
        %v910 = vmul.f32 %v862, %v894
        %v911 = vmul.f32 %v863, %v895
        %v912 = vmul.f32 %v864, %v896
        %v913 = vmul.f32 %v865, %v897
        %v914 = vmul.f32 %v866, %v898
        %v915 = vmul.f32 %v867, %v899
        %v916 = vmul.f32 %v868, %v900
        %v917 = vmul.f32 %v869, %v901
        %v918 = vmul.f32 %v870, %v902
        %v919 = vmul.f32 %v792, %v903
        %v920 = vmul.f32 %v794, %v904
        %v921 = vmul.f32 %v796, %v905
        %v922 = vmul.f32 %v798, %v906
        %v923 = vmul.f32 %v800, %v907
        %v924 = vmul.f32 %v802, %v908
        %v925 = vmul.f32 %v804, %v909
        %v926 = vmul.f32 %v806, %v910
        %v927 = vmul.f32 %v808, %v911
        %v928 = vmul.f32 %v810, %v912
        %v929 = vmul.f32 %v812, %v913
        %v930 = vmul.f32 %v814, %v914
        %v931 = vmul.f32 %v816, %v915
        %v932 = vmul.f32 %v818, %v916
        %v933 = vmul.f32 %v820, %v917
        %v934 = vmul.f32 %v822, %v918
        %v935 = vld [vmem:[#allocation3] sm:$0xff]
        %v936 = vld [vmem:[#allocation3 + $0x8] sm:$0xff]
        %v937 = vld [vmem:[#allocation3 + $0x10] sm:$0xff]
        %v938 = vld [vmem:[#allocation3 + $0x18] sm:$0xff]
        %v939 = vld [vmem:[#allocation3 + $0x20] sm:$0xff]
        %v940 = vld [vmem:[#allocation3 + $0x28] sm:$0xff]
        %v941 = vld [vmem:[#allocation3 + $0x30] sm:$0xff]
        %v942 = vld [vmem:[#allocation3 + $0x38] sm:$0xff]
        %v943 = vld [vmem:[#allocation3 + $0x40] sm:$0xff]
        %v944 = vld [vmem:[#allocation3 + $0x48] sm:$0xff]
        %v945 = vld [vmem:[#allocation3 + $0x50] sm:$0xff]
        %v946 = vld [vmem:[#allocation3 + $0x58] sm:$0xff]
        %v947 = vld [vmem:[#allocation3 + $0x60] sm:$0xff]
        %v948 = vld [vmem:[#allocation3 + $0x68] sm:$0xff]
        %v949 = vld [vmem:[#allocation3 + $0x70] sm:$0xff]
        %v950 = vld [vmem:[#allocation3 + $0x78] sm:$0xff]
        %951 = vmatpush.msra.mxu0 %v950
        %952 = vmatpush.msra.mxu0 %v949
        %953 = vmatpush.msra.mxu0 %v948
        %954 = vmatpush.msra.mxu0 %v947
        %955 = vmatpush.msra.mxu0 %v946
        %956 = vmatpush.msra.mxu0 %v945
        %957 = vmatpush.msra.mxu0 %v944
        %958 = vmatpush.msra.mxu0 %v943
        %959 = vmatpush.msra.mxu0 %v942
        %960 = vmatpush.msra.mxu0 %v941
        %961 = vmatpush.msra.mxu0 %v940
        %962 = vmatpush.msra.mxu0 %v939
        %963 = vmatpush.msra.mxu0 %v938
        %964 = vmatpush.msra.mxu0 %v937
        %965 = vmatpush.msra.mxu0 %v936
        %966 = vmatpush.msra.mxu0 %v935
        %967 = vmatmul.f32.gmra.mxu0 %v919
        %v968 = vpop.f32.mrf.mxu0
        %v969 = vadd.f32 0.0, %v968
        %970 = vmatmul.f32.gmra.mxu0 %v920
        %v971 = vpop.f32.mrf.mxu0
        %v972 = vadd.f32 0.0, %v971
        %973 = vmatmul.f32.gmra.mxu0 %v921
        %v974 = vpop.f32.mrf.mxu0
        %v975 = vadd.f32 0.0, %v974
        %976 = vmatmul.f32.gmra.mxu0 %v922
        %v977 = vpop.f32.mrf.mxu0
        %v978 = vadd.f32 0.0, %v977
        %979 = vmatmul.f32.gmra.mxu0 %v923
        %v980 = vpop.f32.mrf.mxu0
        %v981 = vadd.f32 0.0, %v980
        %982 = vmatmul.f32.gmra.mxu0 %v924
        %v983 = vpop.f32.mrf.mxu0
        %v984 = vadd.f32 0.0, %v983
        %985 = vmatmul.f32.gmra.mxu0 %v925
        %v986 = vpop.f32.mrf.mxu0
        %v987 = vadd.f32 0.0, %v986
        %988 = vmatmul.f32.gmra.mxu0 %v926
        %v989 = vpop.f32.mrf.mxu0
        %v990 = vadd.f32 0.0, %v989
        %991 = vmatmul.f32.gmra.mxu0 %v927
        %v992 = vpop.f32.mrf.mxu0
        %v993 = vadd.f32 0.0, %v992
        %994 = vmatmul.f32.gmra.mxu0 %v928
        %v995 = vpop.f32.mrf.mxu0
        %v996 = vadd.f32 0.0, %v995
        %997 = vmatmul.f32.gmra.mxu0 %v929
        %v998 = vpop.f32.mrf.mxu0
        %v999 = vadd.f32 0.0, %v998
        %1000 = vmatmul.f32.gmra.mxu0 %v930
        %v1001 = vpop.f32.mrf.mxu0
        %v1002 = vadd.f32 0.0, %v1001
        %1003 = vmatmul.f32.gmra.mxu0 %v931
        %v1004 = vpop.f32.mrf.mxu0
        %v1005 = vadd.f32 0.0, %v1004
        %1006 = vmatmul.f32.gmra.mxu0 %v932
        %v1007 = vpop.f32.mrf.mxu0
        %v1008 = vadd.f32 0.0, %v1007
        %1009 = vmatmul.f32.gmra.mxu0 %v933
        %v1010 = vpop.f32.mrf.mxu0
        %v1011 = vadd.f32 0.0, %v1010
        %1012 = vmatmul.f32.gmra.mxu0 %v934
        %v1013 = vpop.f32.mrf.mxu0
        %v1014 = vadd.f32 0.0, %v1013
        %1015 = vdwg.mxu0
        %1016 = vst [vmem:[%s237] sm:$0xff] %v969
        %1017 = vst [vmem:[%s237 + $0x8] sm:$0xff] %v972
        %1018 = vst [vmem:[%s237 + $0x10] sm:$0xff] %v975
        %1019 = vst [vmem:[%s237 + $0x18] sm:$0xff] %v978
        %1020 = vst [vmem:[%s237 + $0x20] sm:$0xff] %v981
        %1021 = vst [vmem:[%s237 + $0x28] sm:$0xff] %v984
        %1022 = vst [vmem:[%s237 + $0x30] sm:$0xff] %v987
        %1023 = vst [vmem:[%s237 + $0x38] sm:$0xff] %v990
        %1024 = vst [vmem:[%s237 + $0x40] sm:$0xff] %v993
        %1025 = vst [vmem:[%s237 + $0x48] sm:$0xff] %v996
        %1026 = vst [vmem:[%s237 + $0x50] sm:$0xff] %v999
        %1027 = vst [vmem:[%s237 + $0x58] sm:$0xff] %v1002
        %1028 = vst [vmem:[%s237 + $0x60] sm:$0xff] %v1005
        %1029 = vst [vmem:[%s237 + $0x68] sm:$0xff] %v1008
        %1030 = vst [vmem:[%s237 + $0x70] sm:$0xff] %v1011
        %1031 = vst [vmem:[%s237 + $0x78] sm:$0xff] %v1014
        %1032 = vst [vmem:[%s244] sm:$0xff] %v919
        %1033 = vst [vmem:[%s244 + $0x8] sm:$0xff] %v920
        %1034 = vst [vmem:[%s244 + $0x10] sm:$0xff] %v921
        %1035 = vst [vmem:[%s244 + $0x18] sm:$0xff] %v922
        %1036 = vst [vmem:[%s244 + $0x20] sm:$0xff] %v923
        %1037 = vst [vmem:[%s244 + $0x28] sm:$0xff] %v924
        %1038 = vst [vmem:[%s244 + $0x30] sm:$0xff] %v925
        %1039 = vst [vmem:[%s244 + $0x38] sm:$0xff] %v926
        %1040 = vst [vmem:[%s244 + $0x40] sm:$0xff] %v927
        %1041 = vst [vmem:[%s244 + $0x48] sm:$0xff] %v928
        %1042 = vst [vmem:[%s244 + $0x50] sm:$0xff] %v929
        %1043 = vst [vmem:[%s244 + $0x58] sm:$0xff] %v930
        %1044 = vst [vmem:[%s244 + $0x60] sm:$0xff] %v931
        %1045 = vst [vmem:[%s244 + $0x68] sm:$0xff] %v932
        %1046 = vst [vmem:[%s244 + $0x70] sm:$0xff] %v933
        %1047 = vst [vmem:[%s244 + $0x78] sm:$0xff] %v934
        %s1048 = sand.u32 %s134, 1
        %s1049 = scalar_lea.sflag [#allocation5], %s1048
        %s1050 = sand.u32 %s134, 1
        %s1051 = smul.addr %s1050, 128
        %s1052 = scalar_lea.vmem [#allocation4], %s1051
        %s1053 = sand.u32 %s162, 1
        %s1054 = scalar_lea.sflag [#allocation7], %s1053
        %s1055 = sand.u32 %s162, 1
        %s1056 = smul.addr %s1055, 128
        %s1057 = scalar_lea.vmem [#allocation6], %s1056
        // Predicated region
        $region41: #{tpu_custom_call.1} parent=35 // pred_check
          %p1058 = pneg %p144
        $region42: #{tpu_custom_call.1} parent=35 // pred_check_branch
          %1060 = sbr.rel (%p1058) target = $region44
        $region43: #{tpu_custom_call.1} parent=35 // pred_region
          %s1061 = smul.u32 16, %s28
          %1063 = vsyncadd %s1049, 0
          %s1064 = smul.addr %s27, 16
          %s1065 = sadd.s32 %s1061, %s1064
          %s1066 = smul.addr %s1065, 8
          %s1067 = scalar_lea.hbm %s4, %s1066
          %s1068 = sshll.u32 %s1052, 4
          %s1069 = int_to_ptr.vmem [resolvable:$true] %s1068
          %s1070 = sshll.u32 %s1067, 4
          %s1071 = int_to_ptr.hbm [resolvable:$true] %s1070
          %1076 = dma.vmem_to_hbm [thread:$0]  %s1069, 2048, %s1071, %s1049, 128, 128, 8
        $region44: #{tpu_custom_call.1} parent=35 // pred_fallthru
          _
        // Predicated region
        $region45: #{tpu_custom_call.1} parent=35 // pred_check
          %p1077 = pneg %p172
        $region46: #{tpu_custom_call.1} parent=35 // pred_check_branch
          %1079 = sbr.rel (%p1077) target = $region48
        $region47: #{tpu_custom_call.1} parent=35 // pred_region
          %s1080 = smul.u32 16, %s28
          %1082 = vsyncadd %s1054, 0
          %s1083 = smul.addr %s27, 16
          %s1084 = sadd.s32 %s1080, %s1083
          %s1085 = smul.addr %s1084, 8
          %s1086 = scalar_lea.hbm %s5, %s1085
          %s1087 = sshll.u32 %s1057, 4
          %s1088 = int_to_ptr.vmem [resolvable:$true] %s1087
          %s1089 = sshll.u32 %s1086, 4
          %s1090 = int_to_ptr.hbm [resolvable:$true] %s1089
          %1095 = dma.vmem_to_hbm [thread:$0]  %s1088, 2048, %s1090, %s1054, 128, 128, 8
        $region48: #{tpu_custom_call.1} parent=35 // pred_fallthru
          _
      $region36: #{tpu_custom_call.1} parent=5 // pred_fallthru
        _
      %p1096 = scmp.le.s32.totalorder 2, %s18
      // Predicated region
      $region49: #{tpu_custom_call.1} parent=5 // pred_check
        %p1097 = pneg %p1096
      $region50: #{tpu_custom_call.1} parent=5 // pred_check_branch
        %1099 = sbr.rel (%p1097) target = $region52
      $region51: #{tpu_custom_call.1} parent=5 // pred_region
        %s1100 = ssub.s32 %s18, 2
        // Predicated region
        $region53: #{tpu_custom_call.1} parent=51 // pred_check
          %p1101 = pneg %p150
        $region54: #{tpu_custom_call.1} parent=51 // pred_check_branch
          %1103 = sbr.rel (%p1101) target = $region56
        $region55: #{tpu_custom_call.1} parent=51 // pred_region
          %s1104 = sand.u32 %s135, 1
          %s1105 = scalar_lea.sflag [#allocation5], %s1104
          %s1106 = sand.u32 %s135, 1
          %s1107 = smul.addr %s1106, 128
          %s1108 = scalar_lea.vmem [#allocation4], %s1107
          %1110 = dma.done %s1105, 2048
        $region56: #{tpu_custom_call.1} parent=51 // pred_fallthru
          _
        // Predicated region
        $region57: #{tpu_custom_call.1} parent=51 // pred_check
          %p1111 = pneg %p178
        $region58: #{tpu_custom_call.1} parent=51 // pred_check_branch
          %1113 = sbr.rel (%p1111) target = $region60
        $region59: #{tpu_custom_call.1} parent=51 // pred_region
          %s1114 = sand.u32 %s163, 1
          %s1115 = scalar_lea.sflag [#allocation7], %s1114
          %s1116 = sand.u32 %s163, 1
          %s1117 = smul.addr %s1116, 128
          %s1118 = scalar_lea.vmem [#allocation6], %s1117
          %1120 = dma.done %s1115, 2048
        $region60: #{tpu_custom_call.1} parent=51 // pred_fallthru
          _
      $region52: #{tpu_custom_call.1} parent=5 // pred_fallthru
        _
    $region6: #{tpu_custom_call.1} parent=1 // loop_footer
      %s22 = sadd.s32 1, %s18
    $region7: #{tpu_custom_call.1} parent=1 // loop_footer_branch
      %17 = sbr.rel target = $region3
    $region8: #{tpu_custom_call.1} parent=1 // loop_exit
      _
    %1121 = vsyncpa [#allocation5], 1
    %s1122 = scalar_lea.sflag [#allocation5], 1
    %1123 = vsyncpa %s1122, 1
    %1124 = vsyncpa [#allocation7], 1
    %s1125 = scalar_lea.sflag [#allocation7], 1
    %1126 = vsyncpa %s1125, 1

</llo_original>
